<compile_context>
chip_gen: v5e
topology: v5e:2x2
jax: 0.10.0
libtpu: 0.0.40
codegen_flags: <defaults>
</compile_context>

<pallas_src>
import functools

import jax
import jax.numpy as jnp
from jax.experimental import pallas as pl
from jax.experimental.pallas import tpu as pltpu

GAMMA = 2.0
CLASSIFIC_LOSS_WEIGHT = 5.0


# ---------------------------------------------------------------------------
# fused kernel
#   grid = (P, steps): axis 0 "parallel" (core split), axis 1 "arbitrary"
#   (row-tile reduction).  Logits/labels are small resident blocks.
# ---------------------------------------------------------------------------
def _fused_loss_kernel(x_ref, t_ref, inp_ref, ae1_ref, ae2_ref, ae4_ref,
                       out_ref, acc_ref, fl_ref, *,
                       inv_count, gamma, cls_weight):
    p = pl.program_id(0)
    s = pl.program_id(1)

    @pl.when(s == 0)
    def _init():
        acc_ref[...] = jnp.zeros_like(acc_ref)
        fl_ref[...] = jnp.zeros_like(fl_ref)

    # --- focal loss: once, on the first step of slice 0 --------------------
    # EUP/XLU work here overlaps the DMA prefetch of later MSE tiles.
    @pl.when(jnp.logical_and(s == 0, p == 0))
    def _focal():
        x = x_ref[...].astype(jnp.float32)                 # (N, C)
        t = t_ref[...]                                     # (N, 1) int32
        m = jnp.max(x, axis=-1, keepdims=True)
        z = x - m
        lse = jnp.log(jnp.sum(jnp.exp(z), axis=-1, keepdims=True))
        logsoft = z - lse                                  # log_softmax
        col = jax.lax.broadcasted_iota(jnp.int32, x.shape, 1)
        onehot = col == t                                  # gather(1, labels)
        logp = jnp.sum(jnp.where(onehot, logsoft, 0.0), axis=-1, keepdims=True)
        prob = jnp.exp(logp)
        omp = 1.0 - prob
        if gamma == 2:                 # static specialization: no pow/log/exp
            w = omp * omp
        else:
            w = jnp.maximum(omp, 0.0) ** gamma
        loss_vec = -w * logp                               # (N, 1)
        fl_ref[...] = (jnp.sum(loss_vec, axis=0, keepdims=True)
                       * (1.0 / loss_vec.shape[0]))        # mean -> (1, 1)

    # --- streamed MSE partial sums: pure VPU per step -----------------------
    inp = inp_ref[...].astype(jnp.float32)
    d1 = inp - ae1_ref[...].astype(jnp.float32)
    d2 = inp - ae2_ref[...].astype(jnp.float32)
    d4 = inp - ae4_ref[...].astype(jnp.float32)
    sq = d1 * d1 + d2 * d2 + d4 * d4                       # (tile, K)
    tile, k = sq.shape
    # fold to the vreg-sized accumulator: whole-vreg adds, no per-step XLU
    acc_ref[...] += jnp.sum(sq.reshape(tile // 8, 8, k), axis=0)

    @pl.when(s == pl.num_programs(1) - 1)
    def _finalize():
        # tiny (8, K) reduction only; fl_ref is zero on slices p != 0
        out_ref[...] = (cls_weight * fl_ref[...]
                        + jnp.sum(acc_ref[...]) * inv_count)


def _vmem_budget():
    """(streamed-tile budget, vmem_limit_bytes) sized per generation."""
    cap = 64 * 1024 * 1024                       # conservative default (v7x)
    try:
        cap = int(pltpu.get_tpu_info().vmem_capacity_bytes)
    except Exception:
        pass
    limit = min(cap * 3 // 4, 96 * 1024 * 1024)  # ~48 MiB v7x, 96 MiB v5e/v6e
    budget = int(limit * 0.85)
    return budget, limit


# ---------------------------------------------------------------------------
# my_loss2 forward
# ---------------------------------------------------------------------------
def my_loss2(X, target, inputs, X_AE1, X_AE2, X_AE4,
             gamma=GAMMA, cls_weight=CLASSIFIC_LOSS_WEIGHT):
    # classification logits / labels (labels view(-1,1), preds view(-1, C))
    x2d = X.reshape(-1, X.shape[-1])
    t2d = target.reshape(-1, 1).astype(jnp.int32)
    n, c = x2d.shape

    # --- lane-dense streamed layout, independent of H*W geometry -----------
    E = inputs.size                                # true element count
    if E >= 512:
        K = 512
    elif E >= 128:
        K = 128
    else:
        K = E
    rows_raw = pl.cdiv(E, K)

    itemsize = max(a.dtype.itemsize for a in (inputs, X_AE1, X_AE2, X_AE4))
    budget, vmem_limit = _vmem_budget()
    resident = 2 * (x2d.size * x2d.dtype.itemsize + t2d.size * 4)
    acc_bytes = 8 * K * 4
    per_row = K * 4 * 2 * itemsize                 # 4 streams x 2 pipeline bufs
    avail = max(budget - resident - acc_bytes - (1 << 16), per_row * 8)
    cap_rows = max(8, (avail // per_row) // 8 * 8)

    # row tile (multiple of 8) within budget; split across P=2 cores if there
    # is enough work, then rebalance the tile so padding stays < 8*P rows.
    tile0 = min(cap_rows, pl.cdiv(rows_raw, 8) * 8)
    P = 2 if pl.cdiv(rows_raw, tile0) >= 2 else 1
    steps = pl.cdiv(rows_raw, tile0 * P)
    tile = pl.cdiv(pl.cdiv(rows_raw, P * steps), 8) * 8
    rows_pad = P * steps * tile
    inv_count = 1.0 / float(E)

    def prep(a):
        flat = a.reshape(-1)
        pad = rows_pad * K - flat.shape[0]
        if pad:
            # zero padding on ALL four tensors -> diff is 0 -> sum unaffected
            flat = jnp.pad(flat, (0, pad))
        return flat.reshape(rows_pad, K)

    inp2d, a1, a2, a4 = prep(inputs), prep(X_AE1), prep(X_AE2), prep(X_AE4)

    out = pl.pallas_call(
        functools.partial(_fused_loss_kernel, inv_count=inv_count,
                          gamma=gamma, cls_weight=cls_weight),
        out_shape=jax.ShapeDtypeStruct((P, 1), jnp.float32),
        grid=(P, steps),
        in_specs=[
            pl.BlockSpec((n, c), lambda p, s: (0, 0)),              # logits
            pl.BlockSpec((n, 1), lambda p, s: (0, 0)),              # labels
            pl.BlockSpec((tile, K), lambda p, s: (p * steps + s, 0)),  # inputs
            pl.BlockSpec((tile, K), lambda p, s: (p * steps + s, 0)),  # X_AE1
            pl.BlockSpec((tile, K), lambda p, s: (p * steps + s, 0)),  # X_AE2
            pl.BlockSpec((tile, K), lambda p, s: (p * steps + s, 0)),  # X_AE4
        ],
        out_specs=pl.BlockSpec((1, 1), lambda p, s: (p, 0)),
        scratch_shapes=[pltpu.VMEM((8, K), jnp.float32),   # folded MSE acc
                        pltpu.VMEM((1, 1), jnp.float32)],  # focal-loss stash
        compiler_params=pltpu.CompilerParams(
            dimension_semantics=("parallel", "arbitrary"),
            vmem_limit_bytes=vmem_limit),
    )(x2d, t2d, inp2d, a1, a2, a4)
    # per-core partials (focal term folded into slice 0) -> scalar loss
    return jnp.sum(out)


# pure-JAX reference for a sanity check
def _reference(X, target, inputs, X_AE1, X_AE2, X_AE4):
    preds = X.reshape(-1, X.shape[-1]).astype(jnp.float32)
    labels = target.reshape(-1)
    logsoft = jax.nn.log_softmax(preds, axis=1)
    logp = jnp.take_along_axis(logsoft, labels[:, None], axis=1)
    p = jnp.exp(logp)
    fl = jnp.mean(-((1.0 - p) ** GAMMA) * logp)
    inp = inputs.astype(jnp.float32)
    mse = lambda a, b: jnp.mean((a - b.astype(jnp.float32)) ** 2)
    return (CLASSIFIC_LOSS_WEIGHT * fl + mse(inp, X_AE1) + mse(inp, X_AE2)
            + mse(inp, X_AE4))


if __name__ == "__main__":
    key = jax.random.PRNGKey(0)
    k1, k2, k3, k4, k5, k6 = jax.random.split(key, 6)

    N, C = 8, 4                                   # 8 samples, 4 classes
    B, CH, H, W = 2, 4, 16, 16                    # reconstruction tensors (NCHW)

    X = jax.random.normal(k1, (N, C), dtype=jnp.float32)
    target = jax.random.randint(k2, (N,), 0, C, dtype=jnp.int32)
    inputs = jax.random.normal(k3, (B, CH, H, W), dtype=jnp.float32)
    X_AE1 = jax.random.normal(k4, (B, CH, H, W), dtype=jnp.float32)
    X_AE2 = jax.random.normal(k5, (B, CH, H, W), dtype=jnp.float32)
    X_AE4 = jax.random.normal(k6, (B, CH, H, W), dtype=jnp.float32)

    loss = my_loss2(X, target, inputs, X_AE1, X_AE2, X_AE4)
    loss = jax.block_until_ready(loss)

    ref = _reference(X, target, inputs, X_AE1, X_AE2, X_AE4)
    assert jnp.allclose(loss, ref, rtol=1e-5, atol=1e-5), (loss, ref)

    print("KERNEL_OK")
</pallas_src>

<mosaic_0001>
module attributes {stable_mosaic.version = 11 : i64} {
  func.func @_fused_loss_kernel(%arg0: i32, %arg1: i32, %arg2: memref<8x4xf32, #tpu.memory_space<vmem>>, %arg3: memref<8x1xi32, #tpu.memory_space<vmem>>, %arg4: memref<8x512xf32, #tpu.memory_space<vmem>>, %arg5: memref<8x512xf32, #tpu.memory_space<vmem>>, %arg6: memref<8x512xf32, #tpu.memory_space<vmem>>, %arg7: memref<8x512xf32, #tpu.memory_space<vmem>>, %arg8: memref<1x1xf32, #tpu.memory_space<vmem>>, %arg9: memref<8x512xf32, #tpu.memory_space<vmem>>, %arg10: memref<1x1xf32, #tpu.memory_space<vmem>>) attributes {dimension_semantics = [#tpu.dimension_semantics<parallel>, #tpu.dimension_semantics<arbitrary>], iteration_bounds = array<i64: 1, 1>, scalar_prefetch = 0 : i64, scratch_operands = 2 : i64, tpu.core_type = #tpu.core_type<tc>, window_params = [{pipeline_mode = #tpu.pipeline_mode<synchronous>, transform_indices = @transform_0, window_bounds = array<i64: 8, 4>}, {pipeline_mode = #tpu.pipeline_mode<synchronous>, transform_indices = @transform_1, window_bounds = array<i64: 8, 1>}, {transform_indices = @transform_2, window_bounds = array<i64: 8, 512>}, {transform_indices = @transform_3, window_bounds = array<i64: 8, 512>}, {transform_indices = @transform_4, window_bounds = array<i64: 8, 512>}, {transform_indices = @transform_5, window_bounds = array<i64: 8, 512>}, {transform_indices = @transform_6, window_bounds = array<i64: 1, 1>}]} {
    %c0_i32 = arith.constant 0 : i32
    %0 = arith.cmpi eq, %arg1, %c0_i32 : i32
    %1 = arith.extui %0 : i1 to i32
    %c0_i32_0 = arith.constant 0 : i32
    %2 = arith.cmpi ne, %1, %c0_i32_0 : i32
    scf.if %2 {
      %cst_17 = arith.constant 0.000000e+00 : f32
      %28 = vector.broadcast %cst_17 : f32 to vector<8x512xf32>
      %c0_18 = arith.constant 0 : index
      %c0_19 = arith.constant 0 : index
      %29 = vector.load %arg9[%c0_18, %c0_19] : memref<8x512xf32, #tpu.memory_space<vmem>>, vector<8x512xf32>
      tpu.vector_store %arg9[%c0_18, %c0_19], %28 {strides = array<i32>} : memref<8x512xf32, #tpu.memory_space<vmem>>, vector<8x512xf32>,
      %cst_20 = arith.constant 0.000000e+00 : f32
      %30 = vector.broadcast %cst_20 : f32 to vector<1x1xf32>
      %c0_21 = arith.constant 0 : index
      %c0_22 = arith.constant 0 : index
      %31 = vector.load %arg10[%c0_21, %c0_22] : memref<1x1xf32, #tpu.memory_space<vmem>>, vector<1x1xf32>
      tpu.vector_store %arg10[%c0_21, %c0_22], %30 {strides = array<i32>} : memref<1x1xf32, #tpu.memory_space<vmem>>, vector<1x1xf32>,
    } else {
    }
    %c0_i32_1 = arith.constant 0 : i32
    %3 = arith.cmpi eq, %arg1, %c0_i32_1 : i32
    %c0_i32_2 = arith.constant 0 : i32
    %4 = arith.cmpi eq, %arg0, %c0_i32_2 : i32
    %5 = arith.andi %3, %4 : i1
    %6 = arith.extui %5 : i1 to i32
    %c0_i32_3 = arith.constant 0 : i32
    %7 = arith.cmpi ne, %6, %c0_i32_3 : i32
    scf.if %7 {
      %c0_17 = arith.constant 0 : index
      %c0_18 = arith.constant 0 : index
      %28 = vector.load %arg2[%c0_17, %c0_18] : memref<8x4xf32, #tpu.memory_space<vmem>>, vector<8x4xf32>
      %c0_19 = arith.constant 0 : index
      %c0_20 = arith.constant 0 : index
      %29 = vector.load %arg3[%c0_19, %c0_20] : memref<8x1xi32, #tpu.memory_space<vmem>>, vector<8x1xi32>
      %cst_21 = arith.constant dense<0xFF800000> : vector<8xf32>
      %30 = vector.multi_reduction <maximumf>, %28, %cst_21 [1] : vector<8x4xf32> to vector<8xf32>
      %31 = vector.shape_cast %30 : vector<8xf32> to vector<8x1xf32>
      %32 = vector.broadcast %31 : vector<8x1xf32> to vector<8x4xf32>
      %33 = arith.subf %28, %32 : vector<8x4xf32>
      %34 = math.exp %33 : vector<8x4xf32>
      %cst_22 = arith.constant dense<0.000000e+00> : vector<8xf32>
      %35 = vector.multi_reduction <add>, %34, %cst_22 [1] : vector<8x4xf32> to vector<8xf32>
      %36 = vector.shape_cast %35 : vector<8xf32> to vector<8x1xf32>
      %37 = math.log %36 : vector<8x1xf32>
      %38 = vector.broadcast %37 : vector<8x1xf32> to vector<8x4xf32>
      %39 = arith.subf %33, %38 : vector<8x4xf32>
      %40 = tpu.iota {dimensions = array<i32: 1>} : vector<8x4xi32>
      %41 = vector.broadcast %29 : vector<8x1xi32> to vector<8x4xi32>
      %42 = arith.cmpi eq, %40, %41 : vector<8x4xi32>
      %cst_23 = arith.constant 0.000000e+00 : f32
      %43 = vector.broadcast %cst_23 : f32 to vector<8x4xf32>
      %44 = arith.select %42, %39, %43 : vector<8x4xi1>, vector<8x4xf32>
      %cst_24 = arith.constant dense<0.000000e+00> : vector<8xf32>
      %45 = vector.multi_reduction <add>, %44, %cst_24 [1] : vector<8x4xf32> to vector<8xf32>
      %46 = vector.shape_cast %45 : vector<8xf32> to vector<8x1xf32>
      %47 = math.exp %46 : vector<8x1xf32>
      %cst_25 = arith.constant 1.000000e+00 : f32
      %48 = vector.broadcast %cst_25 : f32 to vector<8x1xf32>
      %49 = arith.subf %48, %47 : vector<8x1xf32>
      %50 = arith.mulf %49, %49 : vector<8x1xf32>
      %cst_26 = arith.constant 0.000000e+00 : f32
      %51 = vector.broadcast %cst_26 : f32 to vector<8x1xf32>
      %52 = arith.subf %51, %50 : vector<8x1xf32>
      %53 = arith.mulf %52, %46 : vector<8x1xf32>
      %cst_27 = arith.constant dense<0.000000e+00> : vector<1xf32>
      %54 = vector.multi_reduction <add>, %53, %cst_27 [0] : vector<8x1xf32> to vector<1xf32>
      %55 = vector.shape_cast %54 : vector<1xf32> to vector<1x1xf32>
      %cst_28 = arith.constant 1.250000e-01 : f32
      %56 = vector.broadcast %cst_28 : f32 to vector<1x1xf32>
      %57 = arith.mulf %55, %56 : vector<1x1xf32>
      %c0_29 = arith.constant 0 : index
      %c0_30 = arith.constant 0 : index
      %58 = vector.load %arg10[%c0_29, %c0_30] : memref<1x1xf32, #tpu.memory_space<vmem>>, vector<1x1xf32>
      tpu.vector_store %arg10[%c0_29, %c0_30], %57 {strides = array<i32>} : memref<1x1xf32, #tpu.memory_space<vmem>>, vector<1x1xf32>,
    } else {
    }
    %c0 = arith.constant 0 : index
    %c0_4 = arith.constant 0 : index
    %8 = vector.load %arg4[%c0, %c0_4] : memref<8x512xf32, #tpu.memory_space<vmem>>, vector<8x512xf32>
    %c0_5 = arith.constant 0 : index
    %c0_6 = arith.constant 0 : index
    %9 = vector.load %arg5[%c0_5, %c0_6] : memref<8x512xf32, #tpu.memory_space<vmem>>, vector<8x512xf32>
    %10 = arith.subf %8, %9 : vector<8x512xf32>
    %c0_7 = arith.constant 0 : index
    %c0_8 = arith.constant 0 : index
    %11 = vector.load %arg6[%c0_7, %c0_8] : memref<8x512xf32, #tpu.memory_space<vmem>>, vector<8x512xf32>
    %12 = arith.subf %8, %11 : vector<8x512xf32>
    %c0_9 = arith.constant 0 : index
    %c0_10 = arith.constant 0 : index
    %13 = vector.load %arg7[%c0_9, %c0_10] : memref<8x512xf32, #tpu.memory_space<vmem>>, vector<8x512xf32>
    %14 = arith.subf %8, %13 : vector<8x512xf32>
    %15 = arith.mulf %10, %10 : vector<8x512xf32>
    %16 = arith.mulf %12, %12 : vector<8x512xf32>
    %17 = arith.addf %15, %16 : vector<8x512xf32>
    %18 = arith.mulf %14, %14 : vector<8x512xf32>
    %19 = arith.addf %17, %18 : vector<8x512xf32>
    %c0_11 = arith.constant 0 : index
    %c0_12 = arith.constant 0 : index
    %20 = vector.load %arg9[%c0_11, %c0_12] : memref<8x512xf32, #tpu.memory_space<vmem>>, vector<8x512xf32>
    %21 = vector.shape_cast %19 : vector<8x512xf32> to vector<1x8x512xf32>
    %cst = arith.constant dense<0.000000e+00> : vector<8x512xf32>
    %22 = vector.multi_reduction <add>, %21, %cst [0] : vector<1x8x512xf32> to vector<8x512xf32>
    %23 = arith.addf %20, %22 : vector<8x512xf32>
    %c0_13 = arith.constant 0 : index
    %c0_14 = arith.constant 0 : index
    %24 = vector.load %arg9[%c0_13, %c0_14] : memref<8x512xf32, #tpu.memory_space<vmem>>, vector<8x512xf32>
    tpu.vector_store %arg9[%c0_13, %c0_14], %23 {strides = array<i32>} : memref<8x512xf32, #tpu.memory_space<vmem>>, vector<8x512xf32>,
    %c0_i32_15 = arith.constant 0 : i32
    %25 = arith.cmpi eq, %arg1, %c0_i32_15 : i32
    %26 = arith.extui %25 : i1 to i32
    %c0_i32_16 = arith.constant 0 : i32
    %27 = arith.cmpi ne, %26, %c0_i32_16 : i32
    scf.if %27 {
      %c0_17 = arith.constant 0 : index
      %c0_18 = arith.constant 0 : index
      %28 = vector.load %arg10[%c0_17, %c0_18] : memref<1x1xf32, #tpu.memory_space<vmem>>, vector<1x1xf32>
      %cst_19 = arith.constant 5.000000e+00 : f32
      %29 = vector.broadcast %cst_19 : f32 to vector<1x1xf32>
      %30 = arith.mulf %29, %28 : vector<1x1xf32>
      %c0_20 = arith.constant 0 : index
      %c0_21 = arith.constant 0 : index
      %31 = vector.load %arg9[%c0_20, %c0_21] : memref<8x512xf32, #tpu.memory_space<vmem>>, vector<8x512xf32>
      %32 = vector.shape_cast %31 : vector<8x512xf32> to vector<1x8x512xf32>
      %cst_22 = arith.constant dense<0.000000e+00> : vector<1xf32>
      %33 = vector.multi_reduction <add>, %32, %cst_22 [1, 2] : vector<1x8x512xf32> to vector<1xf32>
      %34 = vector.shape_cast %33 : vector<1xf32> to vector<1x1x1xf32>
      %35 = vector.extract %34[0, 0, 0] : f32 from vector<1x1x1xf32>
      %cst_23 = arith.constant 4.8828125E-4 : f32
      %36 = arith.mulf %35, %cst_23 : f32
      %37 = vector.broadcast %36 : f32 to vector<1x1xf32>
      %38 = arith.addf %30, %37 : vector<1x1xf32>
      %c0_24 = arith.constant 0 : index
      %c0_25 = arith.constant 0 : index
      %39 = vector.load %arg8[%c0_24, %c0_25] : memref<1x1xf32, #tpu.memory_space<vmem>>, vector<1x1xf32>
      tpu.vector_store %arg8[%c0_24, %c0_25], %38 {strides = array<i32>} : memref<1x1xf32, #tpu.memory_space<vmem>>, vector<1x1xf32>,
    } else {
    }
    return
  }
  func.func @transform_0(%arg0: i32, %arg1: i32) -> (i32, i32) {
    %c0_i32 = arith.constant 0 : i32
    %c0_i32_0 = arith.constant 0 : i32
    %c0_i32_1 = arith.constant 0 : i32
    return %c0_i32, %c0_i32_0 : i32, i32
  }
  func.func @transform_1(%arg0: i32, %arg1: i32) -> (i32, i32) {
    %c0_i32 = arith.constant 0 : i32
    %c0_i32_0 = arith.constant 0 : i32
    %c0_i32_1 = arith.constant 0 : i32
    return %c0_i32, %c0_i32_0 : i32, i32
  }
  func.func @transform_2(%arg0: i32, %arg1: i32) -> (i32, i32) {
    %c1_i32 = arith.constant 1 : i32
    %0 = arith.muli %arg0, %c1_i32 : i32
    %1 = arith.addi %0, %arg1 : i32
    %c0_i32 = arith.constant 0 : i32
    %c0_i32_0 = arith.constant 0 : i32
    return %1, %c0_i32 : i32, i32
  }
  func.func @transform_3(%arg0: i32, %arg1: i32) -> (i32, i32) {
    %c1_i32 = arith.constant 1 : i32
    %0 = arith.muli %arg0, %c1_i32 : i32
    %1 = arith.addi %0, %arg1 : i32
    %c0_i32 = arith.constant 0 : i32
    %c0_i32_0 = arith.constant 0 : i32
    return %1, %c0_i32 : i32, i32
  }
  func.func @transform_4(%arg0: i32, %arg1: i32) -> (i32, i32) {
    %c1_i32 = arith.constant 1 : i32
    %0 = arith.muli %arg0, %c1_i32 : i32
    %1 = arith.addi %0, %arg1 : i32
    %c0_i32 = arith.constant 0 : i32
    %c0_i32_0 = arith.constant 0 : i32
    return %1, %c0_i32 : i32, i32
  }
  func.func @transform_5(%arg0: i32, %arg1: i32) -> (i32, i32) {
    %c1_i32 = arith.constant 1 : i32
    %0 = arith.muli %arg0, %c1_i32 : i32
    %1 = arith.addi %0, %arg1 : i32
    %c0_i32 = arith.constant 0 : i32
    %c0_i32_0 = arith.constant 0 : i32
    return %1, %c0_i32 : i32, i32
  }
  func.func @transform_6(%arg0: i32, %arg1: i32) -> (i32, i32) {
    %c0_i32 = arith.constant 0 : i32
    %c0_i32_0 = arith.constant 0 : i32
    return %arg0, %c0_i32 : i32, i32
  }
}

</mosaic_0001>

<llo_original>
// kernel: tpu_custom_call.1
$region0: #{tpu_custom_call.1}
  #allocation0 [shape = 'u32[]', space=smem, size = 0x4, offset = 0x4, fixed_abs, tag = 'smem constant byte address 0x4 - core index']
  #allocation1 [shape = 'u32[72,128]{1,0:T(1,128)}', space=vmem, size = 0x9000, scoped, tag = 'internal scratch']
  #allocation2 [shape = 'f32[8,512]{1,0:T(8,128)}', space=vmem, size = 0x4000, scoped, tag = 'scratch operand']
  #allocation3 [shape = 'f32[1,1]{1,0:T(1,128)}', space=vmem, size = 0x200, scoped, tag = 'scratch operand']
  %s0 = inlined_call_operand.vmem [shape: f32[8,4], index: 0, kind: input, shape index: {}]
  %s1 = inlined_call_operand.vmem [shape: s32[8,1], index: 1, kind: input, shape index: {}]
  %s2 = inlined_call_operand.hbm [shape: f32[8,512], index: 2, kind: input, shape index: {}]
  %s3 = inlined_call_operand.hbm [shape: f32[8,512], index: 3, kind: input, shape index: {}]
  %s4 = inlined_call_operand.hbm [shape: f32[8,512], index: 4, kind: input, shape index: {}]
  %s5 = inlined_call_operand.hbm [shape: f32[8,512], index: 5, kind: input, shape index: {}]
  %s6 = inlined_call_operand.hbm [shape: f32[1,1], index: 6, kind: output, shape index: {}]
  %s7 = sld [smem:[#allocation0]]
  $region62: #{tpu_custom_call.1} parent=0
    _
  %s9 = ssub.s32 1, %s7
  %s10 = scalar_select 0, %s9, %s7
  $region1: #{tpu_custom_call.1} parent=0
    #allocation4 [shape = 'u8[16384]{0}', space=vmem, size = 0x4000, scoped, tag = 'input window, operand 2, single buffered']
    #allocation5 [shape = 's32[1]{0}', space=sflag, size = 0x4, scoped, tag = 'scoped memory for tpu_custom_call.1']
    #allocation6 [shape = 's32[1]{0}', space=sflag, size = 0x4, scoped, tag = 'scoped memory for tpu_custom_call.1']
    #allocation7 [shape = 'u8[16384]{0}', space=vmem, size = 0x4000, scoped, tag = 'input window, operand 3, single buffered']
    #allocation8 [shape = 's32[1]{0}', space=sflag, size = 0x4, scoped, tag = 'scoped memory for tpu_custom_call.1']
    #allocation9 [shape = 'u8[16384]{0}', space=vmem, size = 0x4000, scoped, tag = 'input window, operand 4, single buffered']
    #allocation10 [shape = 'u8[16384]{0}', space=vmem, size = 0x4000, scoped, tag = 'input window, operand 5, single buffered']
    #allocation11 [shape = 's32[1]{0}', space=sflag, size = 0x4, scoped, tag = 'scoped memory for tpu_custom_call.1']
    #allocation12 [shape = 'u8[512]{0}', space=vmem, size = 0x400, scoped, tag = 'output window, operand 0, single buffered']
    %11 = vsyncpa [#allocation5], 0
    %12 = vsyncpa [#allocation8], 0
    %13 = vsyncpa [#allocation11], 0
    %14 = vsyncpa [#allocation6], 0
    // Predicated region
    $region2: #{tpu_custom_call.1} parent=1 // pred_check
      _
    $region3: #{tpu_custom_call.1} parent=1 // pred_check_branch
      %16 = sbr.rel (0) target = $region5
    $region4: #{tpu_custom_call.1} parent=1 // pred_region
      _
    $region5: #{tpu_custom_call.1} parent=1 // pred_fallthru
      _
    // Predicated region
    $region6: #{tpu_custom_call.1} parent=1 // pred_check
      _
    $region7: #{tpu_custom_call.1} parent=1 // pred_check_branch
      %18 = sbr.rel (0) target = $region9
    $region8: #{tpu_custom_call.1} parent=1 // pred_region
      _
    $region9: #{tpu_custom_call.1} parent=1 // pred_fallthru
      _
    // Predicated region
    $region10: #{tpu_custom_call.1} parent=1 // pred_check
      _
    $region11: #{tpu_custom_call.1} parent=1 // pred_check_branch
      %20 = sbr.rel (0) target = $region13
    $region12: #{tpu_custom_call.1} parent=1 // pred_region
      %s21 = sadd.s32 0, 0
      %23 = vsyncadd [#allocation5], 0
      %s24 = smul.addr %s21, 4
      %s25 = smul.addr %s24, 8
      %s26 = scalar_lea.hbm %s2, %s25
      %s28 = sshll.u32 %s26, 4
      %s29 = int_to_ptr.hbm [resolvable:$true] %s28
      %s30 = sshll.u32 [#allocation4], 4
      %s31 = int_to_ptr.vmem [resolvable:$true] %s30
      %33 = dma.hbm_to_vmem [thread:$0]  %s29, 512, %s31, [#allocation5]
    $region13: #{tpu_custom_call.1} parent=1 // pred_fallthru
      _
    // Predicated region
    $region14: #{tpu_custom_call.1} parent=1 // pred_check
      _
    $region15: #{tpu_custom_call.1} parent=1 // pred_check_branch
      %35 = sbr.rel (0) target = $region17
    $region16: #{tpu_custom_call.1} parent=1 // pred_region
      %s36 = sadd.s32 0, 0
      %38 = vsyncadd [#allocation8], 0
      %s39 = smul.addr %s36, 4
      %s40 = smul.addr %s39, 8
      %s41 = scalar_lea.hbm %s3, %s40
      %s43 = sshll.u32 %s41, 4
      %s44 = int_to_ptr.hbm [resolvable:$true] %s43
      %s45 = sshll.u32 [#allocation7], 4
      %s46 = int_to_ptr.vmem [resolvable:$true] %s45
      %48 = dma.hbm_to_vmem [thread:$0]  %s44, 512, %s46, [#allocation8]
    $region17: #{tpu_custom_call.1} parent=1 // pred_fallthru
      _
    // Predicated region
    $region18: #{tpu_custom_call.1} parent=1 // pred_check
      _
    $region19: #{tpu_custom_call.1} parent=1 // pred_check_branch
      %50 = sbr.rel (0) target = $region21
    $region20: #{tpu_custom_call.1} parent=1 // pred_region
      %s51 = sadd.s32 0, 0
      %53 = vsyncadd [#allocation8], 0
      %s54 = smul.addr %s51, 4
      %s55 = smul.addr %s54, 8
      %s56 = scalar_lea.hbm %s4, %s55
      %s58 = sshll.u32 %s56, 4
      %s59 = int_to_ptr.hbm [resolvable:$true] %s58
      %s60 = sshll.u32 [#allocation9], 4
      %s61 = int_to_ptr.vmem [resolvable:$true] %s60
      %63 = dma.hbm_to_vmem [thread:$0]  %s59, 512, %s61, [#allocation8]
    $region21: #{tpu_custom_call.1} parent=1 // pred_fallthru
      _
    // Predicated region
    $region22: #{tpu_custom_call.1} parent=1 // pred_check
      _
    $region23: #{tpu_custom_call.1} parent=1 // pred_check_branch
      %65 = sbr.rel (0) target = $region25
    $region24: #{tpu_custom_call.1} parent=1 // pred_region
      %s66 = sadd.s32 0, 0
      %68 = vsyncadd [#allocation11], 0
      %s69 = smul.addr %s66, 4
      %s70 = smul.addr %s69, 8
      %s71 = scalar_lea.hbm %s5, %s70
      %s73 = sshll.u32 %s71, 4
      %s74 = int_to_ptr.hbm [resolvable:$true] %s73
      %s75 = sshll.u32 [#allocation10], 4
      %s76 = int_to_ptr.vmem [resolvable:$true] %s75
      %78 = dma.hbm_to_vmem [thread:$0]  %s74, 512, %s76, [#allocation11]
    $region25: #{tpu_custom_call.1} parent=1 // pred_fallthru
      _
    // Predicated region
    $region26: #{tpu_custom_call.1} parent=1 // pred_check
      _
    $region27: #{tpu_custom_call.1} parent=1 // pred_check_branch
      %80 = sbr.rel (0) target = $region29
    $region28: #{tpu_custom_call.1} parent=1 // pred_region
      %82 = dma.done [#allocation5], 512
    $region29: #{tpu_custom_call.1} parent=1 // pred_fallthru
      _
    // Predicated region
    $region30: #{tpu_custom_call.1} parent=1 // pred_check
      _
    $region31: #{tpu_custom_call.1} parent=1 // pred_check_branch
      %84 = sbr.rel (0) target = $region33
    $region32: #{tpu_custom_call.1} parent=1 // pred_region
      %86 = dma.done [#allocation8], 512
    $region33: #{tpu_custom_call.1} parent=1 // pred_fallthru
      _
    // Predicated region
    $region34: #{tpu_custom_call.1} parent=1 // pred_check
      _
    $region35: #{tpu_custom_call.1} parent=1 // pred_check_branch
      %88 = sbr.rel (0) target = $region37
    $region36: #{tpu_custom_call.1} parent=1 // pred_region
      %90 = dma.done [#allocation8], 512
    $region37: #{tpu_custom_call.1} parent=1 // pred_fallthru
      _
    // Predicated region
    $region38: #{tpu_custom_call.1} parent=1 // pred_check
      _
    $region39: #{tpu_custom_call.1} parent=1 // pred_check_branch
      %92 = sbr.rel (0) target = $region41
    $region40: #{tpu_custom_call.1} parent=1 // pred_region
      %94 = dma.done [#allocation11], 512
    $region41: #{tpu_custom_call.1} parent=1 // pred_fallthru
      _
    %s95 = sadd.s32 0, 0
    %s96 = sadd.s32 0, 0
    %s97 = sadd.s32 0, 0
    %s98 = sadd.s32 0, 0
    %p99 = scmp.eq.s32.totalorder 0, 0
    // Predicated region
    $region42: #{tpu_custom_call.1} parent=1 // pred_check
      %p100 = pneg %p99
    $region43: #{tpu_custom_call.1} parent=1 // pred_check_branch
      %102 = sbr.rel (%p100) target = $region45
    $region44: #{tpu_custom_call.1} parent=1 // pred_region
      %103 = vst [vmem:[#allocation2] sm:$0xff] 0.0
      %104 = vst [vmem:[#allocation2 + $0x8] sm:$0xff] 0.0
      %105 = vst [vmem:[#allocation2 + $0x10] sm:$0xff] 0.0
      %106 = vst [vmem:[#allocation2 + $0x18] sm:$0xff] 0.0
      %vm107 = vcmask 0
      %108 = vst.msk [vmem:[#allocation3] sm:$0x1] %vm107, 0.0
    $region45: #{tpu_custom_call.1} parent=1 // pred_fallthru
      _
    %p109 = scmp.eq.s32.totalorder 0, 0
    %p110 = pnand %p99, %p109
    %p111 = pneg %p110
    // Predicated region
    $region46: #{tpu_custom_call.1} parent=1 // pred_check
      _
    $region47: #{tpu_custom_call.1} parent=1 // pred_check_branch
      %113 = sbr.rel (%p110) target = $region49
    $region48: #{tpu_custom_call.1} parent=1 // pred_region
      %v114 = vld [vmem:[%s0] sm:$0xff]
      %v115 = vld [vmem:[%s1] sm:$0xff]
      %vm116 = vcmask 31744
      %v117 = vsel %vm116, %v114, -inf
      %118 = vmax.xlane.f32.xlu0 %v117
      %v119 = vpop.xlane.xlu0 %118
      %v120 = vsub.f32 %v114, %v119
      %v121 = vmul.f32 %v120, 1.442695
      %v122 = vpow.pop %v121
      %v123 = vsel %vm116, %v122, 0.0
      %124 = vadd.xlane.f32.xlu0 %v123
      %v125 = vpop.xlane.xlu0 %124
      %v126 = vlog2.pop %v125
      %v127 = vmul.f32 %v126, 0.6931472
      %v128 = vsub.f32 %v120, %v127
      %v129 = vlaneseq
      %v130 = vand.u32 %v129, 127
      %131 = vset.pattern.permute.xlu0 0
      %132 = vperm.xlu0 %131, %v115
      %v133 = vpop.permute.xlu0 %132
      %vm134 = vcmp.eq.s32.totalorder %v130, %v133
      %v135 = vsel %vm134, %v128, 0.0
      %v136 = vsel %vm116, %v135, 0.0
      %137 = vadd.xlane.f32.xlu0 %v136
      %v138 = vpop.xlane.xlu0 %137
      %v139 = vmul.f32 %v138, 1.442695
      %v140 = vpow.pop %v139
      %v141 = vsub.f32 1.0, %v140
      %v142 = vmul.f32 %v141, %v141
      %v143 = vsub.f32 0.0, %v142
      %v144 = vmul.f32 %v143, %v138
      %v145 = vrot.slane %v144, 4
      %v146 = vadd.f32 %v144, %v145
      %v147 = vrot.slane %v146, 2
      %v148 = vadd.f32 %v146, %v147
      %v149 = vrot.slane %v148, 1
      %v150 = vadd.f32 %v148, %v149
      %v151 = vmul.f32 %v150, 0.125
      %vm152 = vcmask 0
      %153 = vst.msk [vmem:[#allocation3] sm:$0x1] %vm152, %v151
    $region49: #{tpu_custom_call.1} parent=1 // pred_fallthru
      _
    %v154 = vld [vmem:[#allocation4] sm:$0xff]
    %v155 = vld [vmem:[#allocation4 + $0x8] sm:$0xff]
    %v156 = vld [vmem:[#allocation4 + $0x10] sm:$0xff]
    %v157 = vld [vmem:[#allocation4 + $0x18] sm:$0xff]
    %v158 = vld [vmem:[#allocation7] sm:$0xff]
    %v159 = vld [vmem:[#allocation7 + $0x8] sm:$0xff]
    %v160 = vld [vmem:[#allocation7 + $0x10] sm:$0xff]
    %v161 = vld [vmem:[#allocation7 + $0x18] sm:$0xff]
    %v162 = vsub.f32 %v154, %v158
    %v163 = vsub.f32 %v155, %v159
    %v164 = vsub.f32 %v156, %v160
    %v165 = vsub.f32 %v157, %v161
    %v166 = vld [vmem:[#allocation9] sm:$0xff]
    %v167 = vld [vmem:[#allocation9 + $0x8] sm:$0xff]
    %v168 = vld [vmem:[#allocation9 + $0x10] sm:$0xff]
    %v169 = vld [vmem:[#allocation9 + $0x18] sm:$0xff]
    %v170 = vsub.f32 %v154, %v166
    %v171 = vsub.f32 %v155, %v167
    %v172 = vsub.f32 %v156, %v168
    %v173 = vsub.f32 %v157, %v169
    %v174 = vld [vmem:[#allocation10] sm:$0xff]
    %v175 = vld [vmem:[#allocation10 + $0x8] sm:$0xff]
    %v176 = vld [vmem:[#allocation10 + $0x10] sm:$0xff]
    %v177 = vld [vmem:[#allocation10 + $0x18] sm:$0xff]
    %v178 = vsub.f32 %v154, %v174
    %v179 = vsub.f32 %v155, %v175
    %v180 = vsub.f32 %v156, %v176
    %v181 = vsub.f32 %v157, %v177
    %v182 = vmul.f32 %v162, %v162
    %v183 = vmul.f32 %v163, %v163
    %v184 = vmul.f32 %v164, %v164
    %v185 = vmul.f32 %v165, %v165
    %v186 = vmul.f32 %v170, %v170
    %v187 = vmul.f32 %v171, %v171
    %v188 = vmul.f32 %v172, %v172
    %v189 = vmul.f32 %v173, %v173
    %v190 = vadd.f32 %v182, %v186
    %v191 = vadd.f32 %v183, %v187
    %v192 = vadd.f32 %v184, %v188
    %v193 = vadd.f32 %v185, %v189
    %v194 = vmul.f32 %v178, %v178
    %v195 = vmul.f32 %v179, %v179
    %v196 = vmul.f32 %v180, %v180
    %v197 = vmul.f32 %v181, %v181
    %v198 = vadd.f32 %v190, %v194
    %v199 = vadd.f32 %v191, %v195
    %v200 = vadd.f32 %v192, %v196
    %v201 = vadd.f32 %v193, %v197
    %v202 = vld [vmem:[#allocation2] sm:$0xff]
    %v203 = vld [vmem:[#allocation2 + $0x8] sm:$0xff]
    %v204 = vld [vmem:[#allocation2 + $0x10] sm:$0xff]
    %v205 = vld [vmem:[#allocation2 + $0x18] sm:$0xff]
    %v206 = vadd.f32 %v198, 0.0
    %v207 = vadd.f32 %v199, 0.0
    %v208 = vadd.f32 %v200, 0.0
    %v209 = vadd.f32 %v201, 0.0
    %v210 = vadd.f32 %v202, %v206
    %v211 = vadd.f32 %v203, %v207
    %v212 = vadd.f32 %v204, %v208
    %v213 = vadd.f32 %v205, %v209
    %214 = vst [vmem:[#allocation2] sm:$0xff] %v210
    %215 = vst [vmem:[#allocation2 + $0x8] sm:$0xff] %v211
    %216 = vst [vmem:[#allocation2 + $0x10] sm:$0xff] %v212
    %217 = vst [vmem:[#allocation2 + $0x18] sm:$0xff] %v213
    // Predicated region
    $region50: #{tpu_custom_call.1} parent=1 // pred_check
      %p218 = pneg %p99
    $region51: #{tpu_custom_call.1} parent=1 // pred_check_branch
      %220 = sbr.rel (%p218) target = $region53
    $region52: #{tpu_custom_call.1} parent=1 // pred_region
      %v221 = vld [vmem:[#allocation3] sm:$0x1]
      %v222 = vmul.f32 %v221, 5.0
      %v223 = vld [vmem:[#allocation2] sm:$0xff]
      %v224 = vld [vmem:[#allocation2 + $0x8] sm:$0xff]
      %v225 = vld [vmem:[#allocation2 + $0x10] sm:$0xff]
      %v226 = vld [vmem:[#allocation2 + $0x18] sm:$0xff]
      %v227 = vadd.f32 %v223, %v224
      %v228 = vadd.f32 %v227, %v225
      %v229 = vadd.f32 %v228, %v226
      %230 = vadd.xlane.f32.xlu0 %v229
      %v231 = vpop.xlane.xlu0 %230
      %v232 = vrot.slane %v231, 4
      %v233 = vadd.f32 %v231, %v232
      %v234 = vrot.slane %v233, 2
      %v235 = vadd.f32 %v233, %v234
      %v236 = vrot.slane %v235, 1
      %v237 = vadd.f32 %v235, %v236
      %s238 = vtos %v237
      %s239 = smul.f32 %s238, 0.00048828125
      %v240 = vstv %s239
      %v241 = vadd.f32 %v222, %v240
      %vm242 = vcmask 0
      %243 = vst.msk [vmem:[#allocation12] sm:$0x1] %vm242, %v241
    $region53: #{tpu_custom_call.1} parent=1 // pred_fallthru
      _
    // Predicated region
    $region54: #{tpu_custom_call.1} parent=1 // pred_check
      _
    $region55: #{tpu_custom_call.1} parent=1 // pred_check_branch
      %245 = sbr.rel (0) target = $region57
    $region56: #{tpu_custom_call.1} parent=1 // pred_region
      %247 = vsyncadd [#allocation6], 0
      %s249 = sshll.u32 [#allocation12], 4
      %s250 = int_to_ptr.vmem [resolvable:$true] %s249
      %s251 = sshll.u32 %s6, 4
      %s252 = int_to_ptr.hbm [resolvable:$true] %s251
      %254 = dma.vmem_to_hbm [thread:$0]  %s250, 16, %s252, [#allocation6]
    $region57: #{tpu_custom_call.1} parent=1 // pred_fallthru
      _
    // Predicated region
    $region58: #{tpu_custom_call.1} parent=1 // pred_check
      _
    $region59: #{tpu_custom_call.1} parent=1 // pred_check_branch
      %256 = sbr.rel (0) target = $region61
    $region60: #{tpu_custom_call.1} parent=1 // pred_region
      %258 = dma.done [#allocation6], 16
    $region61: #{tpu_custom_call.1} parent=1 // pred_fallthru
      _
    %259 = vsyncpa [#allocation5], 1
    %260 = vsyncpa [#allocation8], 1
    %261 = vsyncpa [#allocation11], 1
    %262 = vsyncpa [#allocation6], 1

</llo_original>
